<compile_context>
chip_gen: v6e
topology: v6e:2x2x1
jax: 0.10.0
libtpu: 0.0.40
codegen_flags: <defaults>
</compile_context>

<pallas_src>
import jax
import jax.numpy as jnp
from jax.experimental import pallas as pl
from jax.experimental.pallas import tpu as pltpu

INPUT_SIZE = 28 * 28    # 784
HIDDEN_SIZE = 100
NUM_CLASSES = 10

H_PAD = 128             # hidden padded to a full lane width
OUT_PAD = 128           # output padded to a full lane width (lane-dense stores)
TILE_B_DEFAULT = 512    # batch tile; safe for v7x's smaller VMEM, >=85% HBM roofline


def _mlp_kernel(x_ref, w1_ref, b1_ref, w2_ref, b2_ref, out_ref):
    # Layer 1: [TILE_B,784] @ [784,128] on the MXU, f32 accumulate.
    h = jnp.dot(x_ref[...], w1_ref[...], preferred_element_type=jnp.float32)
    h = jnp.maximum(h + b1_ref[...], 0.0)          # bias + ReLU in f32 (VPU)
    # Layer 2: [TILE_B,128] @ [128,128] on the MXU, f32 accumulate.
    o = jnp.dot(h.astype(w2_ref.dtype), w2_ref[...],
                preferred_element_type=jnp.float32)
    out_ref[...] = (o + b2_ref[...]).astype(out_ref.dtype)   # lane-dense store


def neural_net_forward(x, w1, b1, w2, b2, *,
                       tile_b=TILE_B_DEFAULT, compute_dtype=jnp.float32):
    """x: [B, 784]; w1: [784, 100]; b1: [100]; w2: [100, 10]; b2: [10]."""
    B = x.shape[0]

    # --- one-time parameter prep: zero-padding is numerically exact ---------
    w1_p = (jnp.zeros((INPUT_SIZE, H_PAD), compute_dtype)
            .at[:, :HIDDEN_SIZE].set(w1.astype(compute_dtype)))
    b1_p = (jnp.zeros((1, H_PAD), jnp.float32)
            .at[:, :HIDDEN_SIZE].set(b1.astype(jnp.float32)))
    w2_p = (jnp.zeros((H_PAD, OUT_PAD), compute_dtype)
            .at[:HIDDEN_SIZE, :NUM_CLASSES].set(w2.astype(compute_dtype)))
    b2_p = (jnp.zeros((1, OUT_PAD), jnp.float32)
            .at[:, :NUM_CLASSES].set(b2.astype(jnp.float32)))

    # --- batch tiling: clamp tile to batch, pad batch to a tile multiple ----
    tile_b = max(8, min(tile_b, ((B + 7) // 8) * 8))
    b_pad = pl.cdiv(B, tile_b) * tile_b
    x_c = x.astype(compute_dtype)
    if b_pad != B:
        x_c = jnp.pad(x_c, ((0, b_pad - B), (0, 0)))

    grid = (b_pad // tile_b,)

    flops = 2 * b_pad * (INPUT_SIZE * H_PAD + H_PAD * OUT_PAD)
    bytes_accessed = (x_c.size * x_c.dtype.itemsize
                      + w1_p.size * w1_p.dtype.itemsize
                      + w2_p.size * w2_p.dtype.itemsize
                      + (b1_p.size + b2_p.size) * 4
                      + b_pad * OUT_PAD * 4)

    out_padded = pl.pallas_call(
        _mlp_kernel,
        out_shape=jax.ShapeDtypeStruct((b_pad, OUT_PAD), jnp.float32),
        grid_spec=pl.GridSpec(
            grid=grid,
            in_specs=[
                # x tile streamed per grid step (pipelined HBM->VMEM DMA).
                pl.BlockSpec((tile_b, INPUT_SIZE), lambda i: (i, 0)),
                # Weights / biases: constant index_map -> stay VMEM-resident.
                pl.BlockSpec((INPUT_SIZE, H_PAD), lambda i: (0, 0)),
                pl.BlockSpec((1, H_PAD), lambda i: (0, 0)),
                pl.BlockSpec((H_PAD, OUT_PAD), lambda i: (0, 0)),
                pl.BlockSpec((1, OUT_PAD), lambda i: (0, 0)),
            ],
            out_specs=pl.BlockSpec((tile_b, OUT_PAD), lambda i: (i, 0)),
        ),
        compiler_params=pltpu.CompilerParams(
            dimension_semantics=("parallel",),   # megacore sharding on v7x
        ),
        cost_estimate=pl.CostEstimate(
            flops=flops, transcendentals=0, bytes_accessed=bytes_accessed),
    )(x_c, w1_p, b1_p, w2_p, b2_p)

    # Drop batch padding and the zero-padded output columns.
    return out_padded[:B, :NUM_CLASSES]


def _reference(x, w1, b1, w2, b2):
    h = jnp.maximum(x @ w1 + b1, 0.0)
    return h @ w2 + b2


if __name__ == "__main__":
    key = jax.random.PRNGKey(0)
    kx, k1, k2, k3, k4 = jax.random.split(key, 5)

    B = 256  # small, but enough to exercise batch tiling (grid of 2 tiles)
    x = jax.random.normal(kx, (B, INPUT_SIZE), dtype=jnp.float32)

    # Deterministic parameter init (Kaiming-uniform-like bounds, like nn.Linear).
    bound1 = 1.0 / (INPUT_SIZE ** 0.5)
    w1 = jax.random.uniform(k1, (INPUT_SIZE, HIDDEN_SIZE), jnp.float32,
                            -bound1, bound1)
    b1 = jax.random.uniform(k2, (HIDDEN_SIZE,), jnp.float32, -bound1, bound1)
    bound2 = 1.0 / (HIDDEN_SIZE ** 0.5)
    w2 = jax.random.uniform(k3, (HIDDEN_SIZE, NUM_CLASSES), jnp.float32,
                            -bound2, bound2)
    b2 = jax.random.uniform(k4, (NUM_CLASSES,), jnp.float32, -bound2, bound2)

    ref = _reference(x, w1, b1, w2, b2)

    # f32 path: exact (matches PyTorch semantics), tight tolerance.
    out = neural_net_forward(x, w1, b1, w2, b2, tile_b=128,
                             compute_dtype=jnp.float32)
    out = jax.block_until_ready(out)
    assert out.shape == (B, NUM_CLASSES)
    assert jnp.allclose(out, ref, atol=1e-4, rtol=1e-4)

    # bf16 MXU path (native on v6e/v7x): looser tolerance.
    out_bf16 = neural_net_forward(x, w1, b1, w2, b2, tile_b=128,
                                  compute_dtype=jnp.bfloat16)
    out_bf16 = jax.block_until_ready(out_bf16)
    assert jnp.allclose(out_bf16, ref, atol=1e-1, rtol=1e-1)

    print("KERNEL_OK")
</pallas_src>

<mosaic_0001>
module attributes {stable_mosaic.version = 11 : i64} {
  func.func @_mlp_kernel(%arg0: i32, %arg1: memref<128x784xf32, #tpu.memory_space<vmem>>, %arg2: memref<784x128xf32, #tpu.memory_space<vmem>>, %arg3: memref<1x128xf32, #tpu.memory_space<vmem>>, %arg4: memref<128x128xf32, #tpu.memory_space<vmem>>, %arg5: memref<1x128xf32, #tpu.memory_space<vmem>>, %arg6: memref<128x128xf32, #tpu.memory_space<vmem>>) attributes {dimension_semantics = [#tpu.dimension_semantics<parallel>], iteration_bounds = array<i64: 2>, scalar_prefetch = 0 : i64, scratch_operands = 0 : i64, tpu.core_type = #tpu.core_type<tc>, window_params = [{transform_indices = @transform_0, window_bounds = array<i64: 128, 784>}, {pipeline_mode = #tpu.pipeline_mode<synchronous>, transform_indices = @transform_1, window_bounds = array<i64: 784, 128>}, {pipeline_mode = #tpu.pipeline_mode<synchronous>, transform_indices = @transform_2, window_bounds = array<i64: 1, 128>}, {pipeline_mode = #tpu.pipeline_mode<synchronous>, transform_indices = @transform_3, window_bounds = array<i64: 128, 128>}, {pipeline_mode = #tpu.pipeline_mode<synchronous>, transform_indices = @transform_4, window_bounds = array<i64: 1, 128>}, {transform_indices = @transform_5, window_bounds = array<i64: 128, 128>}]} {
    %c0 = arith.constant 0 : index
    %c0_0 = arith.constant 0 : index
    %0 = vector.load %arg1[%c0, %c0_0] : memref<128x784xf32, #tpu.memory_space<vmem>>, vector<128x784xf32>
    %c0_1 = arith.constant 0 : index
    %c0_2 = arith.constant 0 : index
    %1 = vector.load %arg2[%c0_1, %c0_2] : memref<784x128xf32, #tpu.memory_space<vmem>>, vector<784x128xf32>
    %cst = arith.constant dense<0.000000e+00> : vector<128x128xf32>
    %2 = tpu.matmul %0, %1, %cst {dimension_numbers = #tpu.dot_dimension_numbers<[1], [0], [0], [1], [0, 0, 1, 1], [], []>} : vector<128x784xf32>, vector<784x128xf32>, vector<128x128xf32> -> vector<128x128xf32>
    %c0_3 = arith.constant 0 : index
    %c0_4 = arith.constant 0 : index
    %3 = vector.load %arg3[%c0_3, %c0_4] : memref<1x128xf32, #tpu.memory_space<vmem>>, vector<1x128xf32>
    %4 = vector.broadcast %3 : vector<1x128xf32> to vector<128x128xf32>
    %5 = arith.addf %2, %4 : vector<128x128xf32>
    %cst_5 = arith.constant 0.000000e+00 : f32
    %6 = vector.broadcast %cst_5 : f32 to vector<128x128xf32>
    %7 = arith.maximumf %5, %6 : vector<128x128xf32>
    %c0_6 = arith.constant 0 : index
    %c0_7 = arith.constant 0 : index
    %8 = vector.load %arg4[%c0_6, %c0_7] : memref<128x128xf32, #tpu.memory_space<vmem>>, vector<128x128xf32>
    %cst_8 = arith.constant dense<0.000000e+00> : vector<128x128xf32>
    %9 = tpu.matmul %7, %8, %cst_8 {dimension_numbers = #tpu.dot_dimension_numbers<[1], [0], [0], [1], [0, 0, 1, 1], [], []>} : vector<128x128xf32>, vector<128x128xf32>, vector<128x128xf32> -> vector<128x128xf32>
    %c0_9 = arith.constant 0 : index
    %c0_10 = arith.constant 0 : index
    %10 = vector.load %arg5[%c0_9, %c0_10] : memref<1x128xf32, #tpu.memory_space<vmem>>, vector<1x128xf32>
    %11 = vector.broadcast %10 : vector<1x128xf32> to vector<128x128xf32>
    %12 = arith.addf %9, %11 : vector<128x128xf32>
    %c0_11 = arith.constant 0 : index
    %c0_12 = arith.constant 0 : index
    %13 = vector.load %arg6[%c0_11, %c0_12] : memref<128x128xf32, #tpu.memory_space<vmem>>, vector<128x128xf32>
    tpu.vector_store %arg6[%c0_11, %c0_12], %12 {strides = array<i32>} : memref<128x128xf32, #tpu.memory_space<vmem>>, vector<128x128xf32>,
    return
  }
  func.func @transform_0(%arg0: i32) -> (i32, i32) {
    %c0_i32 = arith.constant 0 : i32
    %c0_i32_0 = arith.constant 0 : i32
    return %arg0, %c0_i32 : i32, i32
  }
  func.func @transform_1(%arg0: i32) -> (i32, i32) {
    %c0_i32 = arith.constant 0 : i32
    %c0_i32_0 = arith.constant 0 : i32
    %c0_i32_1 = arith.constant 0 : i32
    return %c0_i32, %c0_i32_0 : i32, i32
  }
  func.func @transform_2(%arg0: i32) -> (i32, i32) {
    %c0_i32 = arith.constant 0 : i32
    %c0_i32_0 = arith.constant 0 : i32
    %c0_i32_1 = arith.constant 0 : i32
    return %c0_i32, %c0_i32_0 : i32, i32
  }
  func.func @transform_3(%arg0: i32) -> (i32, i32) {
    %c0_i32 = arith.constant 0 : i32
    %c0_i32_0 = arith.constant 0 : i32
    %c0_i32_1 = arith.constant 0 : i32
    return %c0_i32, %c0_i32_0 : i32, i32
  }
  func.func @transform_4(%arg0: i32) -> (i32, i32) {
    %c0_i32 = arith.constant 0 : i32
    %c0_i32_0 = arith.constant 0 : i32
    %c0_i32_1 = arith.constant 0 : i32
    return %c0_i32, %c0_i32_0 : i32, i32
  }
  func.func @transform_5(%arg0: i32) -> (i32, i32) {
    %c0_i32 = arith.constant 0 : i32
    %c0_i32_0 = arith.constant 0 : i32
    return %arg0, %c0_i32 : i32, i32
  }
}

</mosaic_0001>

<llo_original>
// kernel: tpu_custom_call.1
$region0: #{tpu_custom_call.1}
  #allocation0 [shape = 'u32[]', space=smem, size = 0x4, offset = 0x4, fixed_abs, tag = 'smem constant byte address 0x4 - core index']
  #allocation1 [shape = 'u32[144,128]{1,0:T(1,128)}', space=vmem, size = 0x12000, scoped, tag = 'internal scratch']
  %s0 = inlined_call_operand.vmem [shape: f32[256,784], index: 0, kind: input, shape index: {}]
  %s1 = inlined_call_operand.vmem [shape: f32[784,128], index: 1, kind: input, shape index: {}]
  %s2 = inlined_call_operand.vmem [shape: f32[1,128], index: 2, kind: input, shape index: {}]
  %s3 = inlined_call_operand.vmem [shape: f32[128,128], index: 3, kind: input, shape index: {}]
  %s4 = inlined_call_operand.vmem [shape: f32[1,128], index: 4, kind: input, shape index: {}]
  %s5 = inlined_call_operand.hbm [shape: f32[256,128], index: 5, kind: output, shape index: {}]
  %s6 = sld [smem:[#allocation0]]
  $region53: #{tpu_custom_call.1} parent=0
    _
  %s8 = ssub.s32 1, %s6
  %s9 = scalar_select 0, %s8, %s6
  $region1: #{tpu_custom_call.1} parent=0
    #allocation2 [shape = 'u8[131072]{0}', space=vmem, size = 0x20000, scoped, tag = 'output window, operand 0']
    #allocation3 [shape = 's32[2]{0}', space=sflag, size = 0x8, scoped, tag = 'scoped memory for tpu_custom_call.1']
    %10 = vsyncpa [#allocation3], 0
    %s11 = scalar_lea.sflag [#allocation3], 1
    %12 = vsyncpa %s11, 0
    loop: start=0, step=1, limit=4
    $region2: #{tpu_custom_call.1} parent=1 // loop_pre_header
      _
    $region3: #{tpu_custom_call.1} parent=1 // loop_header
      %s14 = sphi 0, %s18
      %p15 = scmp.ge.s32.totalorder %s14, 4
      %s24 = sphi 0, %s26
      %s27 = sphi 0, %s24
      %s28 = sphi 0, %s27
      %s44 = sphi 0, %s28
      %s48 = sphi 0, %s48
      %s50 = sphi 0, %s48
      %s51 = sphi 0, %s50
      %s65 = sphi 0, %s51
      %s69 = sphi 0, %s69
      %s71 = sphi 0, %s69
      %s72 = sphi 0, %s71
      %s86 = sphi 0, %s72
      %s90 = sphi 0, %s90
      %s92 = sphi 0, %s90
      %s93 = sphi 0, %s92
      %s107 = sphi 0, %s93
      %s111 = sphi 0, %s111
      %s113 = sphi 0, %s111
      %s114 = sphi 0, %s113
      %s128 = sphi 0, %s114
      %s134 = sphi 0, %s136
      %s137 = sphi 0, %s134
      %s138 = sphi 0, %s137
      %s154 = sphi 0, %s138
    $region4: #{tpu_custom_call.1} parent=1 // loop_header_branch
      %17 = sbr.rel (%p15) target = $region8
    $region5: #{tpu_custom_call.1} parent=1 // loop_body
      %s19 = ssub.s32 %s14, 1
      %s20 = ssub.s32 %s14, 2
      %s21 = sadd.s32 %s14, 1
      %s22 = ssub.s32 %s14, %s21
      %p23 = scmp.eq.s32.totalorder %s22, 0
      %s25 = sadd.s32 %s24, 1
      %s26 = scalar_select %p23, %s24, %s25
      %p29 = pneg %p23
      %p30 = scmp.eq.s32.totalorder %s14, 1
      %p31 = por %p29, %p30
      %p32 = scmp.ne.s32.totalorder %s24, %s27
      %p33 = scmp.eq.s32.totalorder %s14, 0
      %p34 = por %p32, %p33
      %p35 = scmp.ne.s32.totalorder %s24, %s27
      %p36 = scmp.eq.s32.totalorder %s19, 1
      %p37 = por %p35, %p36
      %p38 = scmp.ne.s32.totalorder %s27, %s28
      %p39 = scmp.eq.s32.totalorder %s19, 0
      %p40 = por %p38, %p39
      %p41 = scmp.ne.s32.totalorder %s27, %s28
      %p42 = scmp.eq.s32.totalorder %s20, 1
      %p43 = por %p41, %p42
      %p45 = scmp.ne.s32.totalorder %s28, %s44
      %p46 = scmp.eq.s32.totalorder %s20, 0
      %p47 = por %p45, %p46
      %s49 = sadd.s32 %s48, 1
      %p52 = scmp.eq.s32.totalorder %s14, 1
      %p53 = scmp.ne.s32.totalorder %s48, %s50
      %p54 = scmp.eq.s32.totalorder %s14, 0
      %p55 = por %p53, %p54
      %p56 = scmp.ne.s32.totalorder %s48, %s50
      %p57 = scmp.eq.s32.totalorder %s19, 1
      %p58 = por %p56, %p57
      %p59 = scmp.ne.s32.totalorder %s50, %s51
      %p60 = scmp.eq.s32.totalorder %s19, 0
      %p61 = por %p59, %p60
      %p62 = scmp.ne.s32.totalorder %s50, %s51
      %p63 = scmp.eq.s32.totalorder %s20, 1
      %p64 = por %p62, %p63
      %p66 = scmp.ne.s32.totalorder %s51, %s65
      %p67 = scmp.eq.s32.totalorder %s20, 0
      %p68 = por %p66, %p67
      %s70 = sadd.s32 %s69, 1
      %p73 = scmp.eq.s32.totalorder %s14, 1
      %p74 = scmp.ne.s32.totalorder %s69, %s71
      %p75 = scmp.eq.s32.totalorder %s14, 0
      %p76 = por %p74, %p75
      %p77 = scmp.ne.s32.totalorder %s69, %s71
      %p78 = scmp.eq.s32.totalorder %s19, 1
      %p79 = por %p77, %p78
      %p80 = scmp.ne.s32.totalorder %s71, %s72
      %p81 = scmp.eq.s32.totalorder %s19, 0
      %p82 = por %p80, %p81
      %p83 = scmp.ne.s32.totalorder %s71, %s72
      %p84 = scmp.eq.s32.totalorder %s20, 1
      %p85 = por %p83, %p84
      %p87 = scmp.ne.s32.totalorder %s72, %s86
      %p88 = scmp.eq.s32.totalorder %s20, 0
      %p89 = por %p87, %p88
      %s91 = sadd.s32 %s90, 1
      %p94 = scmp.eq.s32.totalorder %s14, 1
      %p95 = scmp.ne.s32.totalorder %s90, %s92
      %p96 = scmp.eq.s32.totalorder %s14, 0
      %p97 = por %p95, %p96
      %p98 = scmp.ne.s32.totalorder %s90, %s92
      %p99 = scmp.eq.s32.totalorder %s19, 1
      %p100 = por %p98, %p99
      %p101 = scmp.ne.s32.totalorder %s92, %s93
      %p102 = scmp.eq.s32.totalorder %s19, 0
      %p103 = por %p101, %p102
      %p104 = scmp.ne.s32.totalorder %s92, %s93
      %p105 = scmp.eq.s32.totalorder %s20, 1
      %p106 = por %p104, %p105
      %p108 = scmp.ne.s32.totalorder %s93, %s107
      %p109 = scmp.eq.s32.totalorder %s20, 0
      %p110 = por %p108, %p109
      %s112 = sadd.s32 %s111, 1
      %p115 = scmp.eq.s32.totalorder %s14, 1
      %p116 = scmp.ne.s32.totalorder %s111, %s113
      %p117 = scmp.eq.s32.totalorder %s14, 0
      %p118 = por %p116, %p117
      %p119 = scmp.ne.s32.totalorder %s111, %s113
      %p120 = scmp.eq.s32.totalorder %s19, 1
      %p121 = por %p119, %p120
      %p122 = scmp.ne.s32.totalorder %s113, %s114
      %p123 = scmp.eq.s32.totalorder %s19, 0
      %p124 = por %p122, %p123
      %p125 = scmp.ne.s32.totalorder %s113, %s114
      %p126 = scmp.eq.s32.totalorder %s20, 1
      %p127 = por %p125, %p126
      %p129 = scmp.ne.s32.totalorder %s114, %s128
      %p130 = scmp.eq.s32.totalorder %s20, 0
      %p131 = por %p129, %p130
      %s132 = ssub.s32 %s14, %s21
      %p133 = scmp.eq.s32.totalorder %s132, 0
      %s135 = sadd.s32 %s134, 1
      %s136 = scalar_select %p133, %s134, %s135
      %p139 = pneg %p133
      %p140 = scmp.eq.s32.totalorder %s14, 1
      %p141 = por %p139, %p140
      %p142 = scmp.ne.s32.totalorder %s134, %s137
      %p143 = scmp.eq.s32.totalorder %s14, 0
      %p144 = por %p142, %p143
      %p145 = scmp.ne.s32.totalorder %s134, %s137
      %p146 = scmp.eq.s32.totalorder %s19, 1
      %p147 = por %p145, %p146
      %p148 = scmp.ne.s32.totalorder %s137, %s138
      %p149 = scmp.eq.s32.totalorder %s19, 0
      %p150 = por %p148, %p149
      %p151 = scmp.ne.s32.totalorder %s137, %s138
      %p152 = scmp.eq.s32.totalorder %s20, 1
      %p153 = por %p151, %p152
      %p155 = scmp.ne.s32.totalorder %s138, %s154
      %p156 = scmp.eq.s32.totalorder %s20, 0
      %p157 = por %p155, %p156
      %p158 = scmp.le.s32.totalorder 1, %s14
      %p159 = scmp.lt.s32.totalorder %s14, 3
      %p160 = pnand %p158, %p159
      %p161 = pneg %p160
      // Predicated region
      $region9: #{tpu_custom_call.1} parent=5 // pred_check
        _
      $region10: #{tpu_custom_call.1} parent=5 // pred_check_branch
        %163 = sbr.rel (%p160) target = $region12
      $region11: #{tpu_custom_call.1} parent=5 // pred_region
        %s164 = ssub.s32 %s14, 1
        // Predicated region
        $region13: #{tpu_custom_call.1} parent=11 // pred_check
          %p165 = pneg %p61
        $region14: #{tpu_custom_call.1} parent=11 // pred_check_branch
          %167 = sbr.rel (%p165) target = $region16
        $region15: #{tpu_custom_call.1} parent=11 // pred_region
          _
        $region16: #{tpu_custom_call.1} parent=11 // pred_fallthru
          _
        // Predicated region
        $region17: #{tpu_custom_call.1} parent=11 // pred_check
          %p168 = pneg %p82
        $region18: #{tpu_custom_call.1} parent=11 // pred_check_branch
          %170 = sbr.rel (%p168) target = $region20
        $region19: #{tpu_custom_call.1} parent=11 // pred_region
          _
        $region20: #{tpu_custom_call.1} parent=11 // pred_fallthru
          _
        // Predicated region
        $region21: #{tpu_custom_call.1} parent=11 // pred_check
          %p171 = pneg %p103
        $region22: #{tpu_custom_call.1} parent=11 // pred_check_branch
          %173 = sbr.rel (%p171) target = $region24
        $region23: #{tpu_custom_call.1} parent=11 // pred_region
          _
        $region24: #{tpu_custom_call.1} parent=11 // pred_fallthru
          _
        // Predicated region
        $region25: #{tpu_custom_call.1} parent=11 // pred_check
          %p174 = pneg %p124
        $region26: #{tpu_custom_call.1} parent=11 // pred_check_branch
          %176 = sbr.rel (%p174) target = $region28
        $region27: #{tpu_custom_call.1} parent=11 // pred_region
          _
        $region28: #{tpu_custom_call.1} parent=11 // pred_fallthru
          _
      $region12: #{tpu_custom_call.1} parent=5 // pred_fallthru
        _
      %p177 = scmp.lt.s32.totalorder %s14, 2
      // Predicated region
      $region29: #{tpu_custom_call.1} parent=5 // pred_check
        %p178 = pneg %p177
      $region30: #{tpu_custom_call.1} parent=5 // pred_check_branch
        %180 = sbr.rel (%p178) target = $region32
      $region31: #{tpu_custom_call.1} parent=5 // pred_region
        // Predicated region
        $region33: #{tpu_custom_call.1} parent=31 // pred_check
          %p181 = pneg %p34
        $region34: #{tpu_custom_call.1} parent=31 // pred_check_branch
          %183 = sbr.rel (%p181) target = $region36
        $region35: #{tpu_custom_call.1} parent=31 // pred_region
          %s184 = smul.u32 16, %s14
          %p185 = scmp.lt.s32.totalorder %s184, 31
          %s186 = scalar_select %p185, %s184, 31
          %s187 = smul.addr %s186, 7
          %s188 = smul.addr %s187, 8
          %s189 = scalar_lea.vmem %s0, %s188
          %s190 = smul.u32 16, %s14
        $region36: #{tpu_custom_call.1} parent=31 // pred_fallthru
          _
      $region32: #{tpu_custom_call.1} parent=5 // pred_fallthru
        _
      %p191 = scmp.le.s32.totalorder 1, %s14
      %p192 = scmp.lt.s32.totalorder %s14, 3
      %p193 = pnand %p191, %p192
      %p194 = pneg %p193
      // Predicated region
      $region37: #{tpu_custom_call.1} parent=5 // pred_check
        _
      $region38: #{tpu_custom_call.1} parent=5 // pred_check_branch
        %196 = sbr.rel (%p193) target = $region40
      $region39: #{tpu_custom_call.1} parent=5 // pred_region
        %s197 = ssub.s32 %s14, 1
        %s198 = smul.u32 16, %s19
        %p199 = scmp.lt.s32.totalorder %s198, 31
        %s200 = scalar_select %p199, %s198, 31
        %s201 = smul.addr %s200, 7
        %s202 = smul.addr %s201, 8
        %s203 = scalar_lea.vmem %s0, %s202
        %p204 = pneg %p40
        %p205 = pneg %p37
        %p206 = pneg %p61
        %p207 = pneg %p58
        %p208 = pneg %p82
        %p209 = pneg %p79
        %p210 = pneg %p103
        %p211 = pneg %p100
        %p212 = pneg %p124
        %p213 = pneg %p121
        %p214 = pneg %p150
        %p215 = pneg %p147
        %s216 = sand.u32 %s137, 1
        %s217 = scalar_lea.sflag [#allocation3], %s216
        %s218 = sand.u32 %s137, 1
        %s219 = smul.addr %s218, 128
        %s220 = scalar_lea.vmem [#allocation2], %s219
        %s221 = smul.u32 16, %s19
        %p222 = scmp.lt.s32.totalorder %s221, 31
        %s223 = scalar_select %p222, %s221, 31
        %s224 = smul.addr %s223, 7
        %s225 = smul.addr %s224, 8
        %s226 = scalar_lea.vmem %s0, %s225
        %s227 = smul.u32 16, %s19
        %s228 = smul.u32 16, %s19
        %v229 = vld [vmem:[%s226] sm:$0xff]
        %v230 = vld [vmem:[%s226 + $0x8] sm:$0xff]
        %v231 = vld [vmem:[%s226 + $0x10] sm:$0xff]
        %v232 = vld [vmem:[%s226 + $0x18] sm:$0xff]
        %v233 = vld [vmem:[%s226 + $0x20] sm:$0xff]
        %v234 = vld [vmem:[%s226 + $0x28] sm:$0xff]
        %v235 = vld [vmem:[%s226 + $0x30] sm:$0xff]
        %v236 = vld [vmem:[%s226 + $0x38] sm:$0xff]
        %v237 = vld [vmem:[%s226 + $0x40] sm:$0xff]
        %v238 = vld [vmem:[%s226 + $0x48] sm:$0xff]
        %v239 = vld [vmem:[%s226 + $0x50] sm:$0xff]
        %v240 = vld [vmem:[%s226 + $0x58] sm:$0xff]
        %v241 = vld [vmem:[%s226 + $0x60] sm:$0xff]
        %v242 = vld [vmem:[%s226 + $0x68] sm:$0xff]
        %v243 = vld [vmem:[%s226 + $0x70] sm:$0xff]
        %v244 = vld [vmem:[%s226 + $0x78] sm:$0xff]
        %v245 = vld [vmem:[%s226 + $0x80] sm:$0xff]
        %v246 = vld [vmem:[%s226 + $0x88] sm:$0xff]
        %v247 = vld [vmem:[%s226 + $0x90] sm:$0xff]
        %v248 = vld [vmem:[%s226 + $0x98] sm:$0xff]
        %v249 = vld [vmem:[%s226 + $0xa0] sm:$0xff]
        %v250 = vld [vmem:[%s226 + $0xa8] sm:$0xff]
        %v251 = vld [vmem:[%s226 + $0xb0] sm:$0xff]
        %v252 = vld [vmem:[%s226 + $0xb8] sm:$0xff]
        %v253 = vld [vmem:[%s226 + $0xc0] sm:$0xff]
        %v254 = vld [vmem:[%s226 + $0xc8] sm:$0xff]
        %v255 = vld [vmem:[%s226 + $0xd0] sm:$0xff]
        %v256 = vld [vmem:[%s226 + $0xd8] sm:$0xff]
        %v257 = vld [vmem:[%s226 + $0xe0] sm:$0xff]
        %v258 = vld [vmem:[%s226 + $0xe8] sm:$0xff]
        %v259 = vld [vmem:[%s226 + $0xf0] sm:$0xff]
        %v260 = vld [vmem:[%s226 + $0xf8] sm:$0xff]
        %v261 = vld [vmem:[%s226 + $0x100] sm:$0xff]
        %v262 = vld [vmem:[%s226 + $0x108] sm:$0xff]
        %v263 = vld [vmem:[%s226 + $0x110] sm:$0xff]
        %v264 = vld [vmem:[%s226 + $0x118] sm:$0xff]
        %v265 = vld [vmem:[%s226 + $0x120] sm:$0xff]
        %v266 = vld [vmem:[%s226 + $0x128] sm:$0xff]
        %v267 = vld [vmem:[%s226 + $0x130] sm:$0xff]
        %v268 = vld [vmem:[%s226 + $0x138] sm:$0xff]
        %v269 = vld [vmem:[%s226 + $0x140] sm:$0xff]
        %v270 = vld [vmem:[%s226 + $0x148] sm:$0xff]
        %v271 = vld [vmem:[%s226 + $0x150] sm:$0xff]
        %v272 = vld [vmem:[%s226 + $0x158] sm:$0xff]
        %v273 = vld [vmem:[%s226 + $0x160] sm:$0xff]
        %v274 = vld [vmem:[%s226 + $0x168] sm:$0xff]
        %v275 = vld [vmem:[%s226 + $0x170] sm:$0xff]
        %v276 = vld [vmem:[%s226 + $0x178] sm:$0xff]
        %v277 = vld [vmem:[%s226 + $0x180] sm:$0xff]
        %v278 = vld [vmem:[%s226 + $0x188] sm:$0xff]
        %v279 = vld [vmem:[%s226 + $0x190] sm:$0xff]
        %v280 = vld [vmem:[%s226 + $0x198] sm:$0xff]
        %v281 = vld [vmem:[%s226 + $0x1a0] sm:$0xff]
        %v282 = vld [vmem:[%s226 + $0x1a8] sm:$0xff]
        %v283 = vld [vmem:[%s226 + $0x1b0] sm:$0xff]
        %v284 = vld [vmem:[%s226 + $0x1b8] sm:$0xff]
        %v285 = vld [vmem:[%s226 + $0x1c0] sm:$0xff]
        %v286 = vld [vmem:[%s226 + $0x1c8] sm:$0xff]
        %v287 = vld [vmem:[%s226 + $0x1d0] sm:$0xff]
        %v288 = vld [vmem:[%s226 + $0x1d8] sm:$0xff]
        %v289 = vld [vmem:[%s226 + $0x1e0] sm:$0xff]
        %v290 = vld [vmem:[%s226 + $0x1e8] sm:$0xff]
        %v291 = vld [vmem:[%s226 + $0x1f0] sm:$0xff]
        %v292 = vld [vmem:[%s226 + $0x1f8] sm:$0xff]
        %v293 = vld [vmem:[%s226 + $0x200] sm:$0xff]
        %v294 = vld [vmem:[%s226 + $0x208] sm:$0xff]
        %v295 = vld [vmem:[%s226 + $0x210] sm:$0xff]
        %v296 = vld [vmem:[%s226 + $0x218] sm:$0xff]
        %v297 = vld [vmem:[%s226 + $0x220] sm:$0xff]
        %v298 = vld [vmem:[%s226 + $0x228] sm:$0xff]
        %v299 = vld [vmem:[%s226 + $0x230] sm:$0xff]
        %v300 = vld [vmem:[%s226 + $0x238] sm:$0xff]
        %v301 = vld [vmem:[%s226 + $0x240] sm:$0xff]
        %v302 = vld [vmem:[%s226 + $0x248] sm:$0xff]
        %v303 = vld [vmem:[%s226 + $0x250] sm:$0xff]
        %v304 = vld [vmem:[%s226 + $0x258] sm:$0xff]
        %v305 = vld [vmem:[%s226 + $0x260] sm:$0xff]
        %v306 = vld [vmem:[%s226 + $0x268] sm:$0xff]
        %v307 = vld [vmem:[%s226 + $0x270] sm:$0xff]
        %v308 = vld [vmem:[%s226 + $0x278] sm:$0xff]
        %v309 = vld [vmem:[%s226 + $0x280] sm:$0xff]
        %v310 = vld [vmem:[%s226 + $0x288] sm:$0xff]
        %v311 = vld [vmem:[%s226 + $0x290] sm:$0xff]
        %v312 = vld [vmem:[%s226 + $0x298] sm:$0xff]
        %v313 = vld [vmem:[%s226 + $0x2a0] sm:$0xff]
        %v314 = vld [vmem:[%s226 + $0x2a8] sm:$0xff]
        %v315 = vld [vmem:[%s226 + $0x2b0] sm:$0xff]
        %v316 = vld [vmem:[%s226 + $0x2b8] sm:$0xff]
        %v317 = vld [vmem:[%s226 + $0x2c0] sm:$0xff]
        %v318 = vld [vmem:[%s226 + $0x2c8] sm:$0xff]
        %v319 = vld [vmem:[%s226 + $0x2d0] sm:$0xff]
        %v320 = vld [vmem:[%s226 + $0x2d8] sm:$0xff]
        %v321 = vld [vmem:[%s226 + $0x2e0] sm:$0xff]
        %v322 = vld [vmem:[%s226 + $0x2e8] sm:$0xff]
        %v323 = vld [vmem:[%s226 + $0x2f0] sm:$0xff]
        %v324 = vld [vmem:[%s226 + $0x2f8] sm:$0xff]
        %v325 = vld [vmem:[%s226 + $0x300] sm:$0xff]
        %v326 = vld [vmem:[%s226 + $0x308] sm:$0xff]
        %v327 = vld [vmem:[%s226 + $0x310] sm:$0xff]
        %v328 = vld [vmem:[%s226 + $0x318] sm:$0xff]
        %v329 = vld [vmem:[%s226 + $0x320] sm:$0xff]
        %v330 = vld [vmem:[%s226 + $0x328] sm:$0xff]
        %v331 = vld [vmem:[%s226 + $0x330] sm:$0xff]
        %v332 = vld [vmem:[%s226 + $0x338] sm:$0xff]
        %v333 = vld [vmem:[%s226 + $0x340] sm:$0xff]
        %v334 = vld [vmem:[%s226 + $0x348] sm:$0xff]
        %v335 = vld [vmem:[%s226 + $0x350] sm:$0xff]
        %v336 = vld [vmem:[%s226 + $0x358] sm:$0xff]
        %v337 = vld [vmem:[%s226 + $0x360] sm:$0xff]
        %v338 = vld [vmem:[%s226 + $0x368] sm:$0xff]
        %v339 = vld [vmem:[%s226 + $0x370] sm:$0xff]
        %v340 = vld [vmem:[%s226 + $0x378] sm:$0xff]
        %v341 = vld [vmem:[%s1] sm:$0xff]
        %v342 = vld [vmem:[%s1 + $0x8] sm:$0xff]
        %v343 = vld [vmem:[%s1 + $0x10] sm:$0xff]
        %v344 = vld [vmem:[%s1 + $0x18] sm:$0xff]
        %v345 = vld [vmem:[%s1 + $0x20] sm:$0xff]
        %v346 = vld [vmem:[%s1 + $0x28] sm:$0xff]
        %v347 = vld [vmem:[%s1 + $0x30] sm:$0xff]
        %v348 = vld [vmem:[%s1 + $0x38] sm:$0xff]
        %v349 = vld [vmem:[%s1 + $0x40] sm:$0xff]
        %v350 = vld [vmem:[%s1 + $0x48] sm:$0xff]
        %v351 = vld [vmem:[%s1 + $0x50] sm:$0xff]
        %v352 = vld [vmem:[%s1 + $0x58] sm:$0xff]
        %v353 = vld [vmem:[%s1 + $0x60] sm:$0xff]
        %v354 = vld [vmem:[%s1 + $0x68] sm:$0xff]
        %v355 = vld [vmem:[%s1 + $0x70] sm:$0xff]
        %v356 = vld [vmem:[%s1 + $0x78] sm:$0xff]
        %v357 = vld [vmem:[%s1 + $0x80] sm:$0xff]
        %v358 = vld [vmem:[%s1 + $0x88] sm:$0xff]
        %v359 = vld [vmem:[%s1 + $0x90] sm:$0xff]
        %v360 = vld [vmem:[%s1 + $0x98] sm:$0xff]
        %v361 = vld [vmem:[%s1 + $0xa0] sm:$0xff]
        %v362 = vld [vmem:[%s1 + $0xa8] sm:$0xff]
        %v363 = vld [vmem:[%s1 + $0xb0] sm:$0xff]
        %v364 = vld [vmem:[%s1 + $0xb8] sm:$0xff]
        %v365 = vld [vmem:[%s1 + $0xc0] sm:$0xff]
        %v366 = vld [vmem:[%s1 + $0xc8] sm:$0xff]
        %v367 = vld [vmem:[%s1 + $0xd0] sm:$0xff]
        %v368 = vld [vmem:[%s1 + $0xd8] sm:$0xff]
        %v369 = vld [vmem:[%s1 + $0xe0] sm:$0xff]
        %v370 = vld [vmem:[%s1 + $0xe8] sm:$0xff]
        %v371 = vld [vmem:[%s1 + $0xf0] sm:$0xff]
        %v372 = vld [vmem:[%s1 + $0xf8] sm:$0xff]
        %v373 = vld [vmem:[%s1 + $0x100] sm:$0xff]
        %v374 = vld [vmem:[%s1 + $0x108] sm:$0xff]
        %v375 = vld [vmem:[%s1 + $0x110] sm:$0xff]
        %v376 = vld [vmem:[%s1 + $0x118] sm:$0xff]
        %v377 = vld [vmem:[%s1 + $0x120] sm:$0xff]
        %v378 = vld [vmem:[%s1 + $0x128] sm:$0xff]
        %v379 = vld [vmem:[%s1 + $0x130] sm:$0xff]
        %v380 = vld [vmem:[%s1 + $0x138] sm:$0xff]
        %v381 = vld [vmem:[%s1 + $0x140] sm:$0xff]
        %v382 = vld [vmem:[%s1 + $0x148] sm:$0xff]
        %v383 = vld [vmem:[%s1 + $0x150] sm:$0xff]
        %v384 = vld [vmem:[%s1 + $0x158] sm:$0xff]
        %v385 = vld [vmem:[%s1 + $0x160] sm:$0xff]
        %v386 = vld [vmem:[%s1 + $0x168] sm:$0xff]
        %v387 = vld [vmem:[%s1 + $0x170] sm:$0xff]
        %v388 = vld [vmem:[%s1 + $0x178] sm:$0xff]
        %v389 = vld [vmem:[%s1 + $0x180] sm:$0xff]
        %v390 = vld [vmem:[%s1 + $0x188] sm:$0xff]
        %v391 = vld [vmem:[%s1 + $0x190] sm:$0xff]
        %v392 = vld [vmem:[%s1 + $0x198] sm:$0xff]
        %v393 = vld [vmem:[%s1 + $0x1a0] sm:$0xff]
        %v394 = vld [vmem:[%s1 + $0x1a8] sm:$0xff]
        %v395 = vld [vmem:[%s1 + $0x1b0] sm:$0xff]
        %v396 = vld [vmem:[%s1 + $0x1b8] sm:$0xff]
        %v397 = vld [vmem:[%s1 + $0x1c0] sm:$0xff]
        %v398 = vld [vmem:[%s1 + $0x1c8] sm:$0xff]
        %v399 = vld [vmem:[%s1 + $0x1d0] sm:$0xff]
        %v400 = vld [vmem:[%s1 + $0x1d8] sm:$0xff]
        %v401 = vld [vmem:[%s1 + $0x1e0] sm:$0xff]
        %v402 = vld [vmem:[%s1 + $0x1e8] sm:$0xff]
        %v403 = vld [vmem:[%s1 + $0x1f0] sm:$0xff]
        %v404 = vld [vmem:[%s1 + $0x1f8] sm:$0xff]
        %v405 = vld [vmem:[%s1 + $0x200] sm:$0xff]
        %v406 = vld [vmem:[%s1 + $0x208] sm:$0xff]
        %v407 = vld [vmem:[%s1 + $0x210] sm:$0xff]
        %v408 = vld [vmem:[%s1 + $0x218] sm:$0xff]
        %v409 = vld [vmem:[%s1 + $0x220] sm:$0xff]
        %v410 = vld [vmem:[%s1 + $0x228] sm:$0xff]
        %v411 = vld [vmem:[%s1 + $0x230] sm:$0xff]
        %v412 = vld [vmem:[%s1 + $0x238] sm:$0xff]
        %v413 = vld [vmem:[%s1 + $0x240] sm:$0xff]
        %v414 = vld [vmem:[%s1 + $0x248] sm:$0xff]
        %v415 = vld [vmem:[%s1 + $0x250] sm:$0xff]
        %v416 = vld [vmem:[%s1 + $0x258] sm:$0xff]
        %v417 = vld [vmem:[%s1 + $0x260] sm:$0xff]
        %v418 = vld [vmem:[%s1 + $0x268] sm:$0xff]
        %v419 = vld [vmem:[%s1 + $0x270] sm:$0xff]
        %v420 = vld [vmem:[%s1 + $0x278] sm:$0xff]
        %v421 = vld [vmem:[%s1 + $0x280] sm:$0xff]
        %v422 = vld [vmem:[%s1 + $0x288] sm:$0xff]
        %v423 = vld [vmem:[%s1 + $0x290] sm:$0xff]
        %v424 = vld [vmem:[%s1 + $0x298] sm:$0xff]
        %v425 = vld [vmem:[%s1 + $0x2a0] sm:$0xff]
        %v426 = vld [vmem:[%s1 + $0x2a8] sm:$0xff]
        %v427 = vld [vmem:[%s1 + $0x2b0] sm:$0xff]
        %v428 = vld [vmem:[%s1 + $0x2b8] sm:$0xff]
        %v429 = vld [vmem:[%s1 + $0x2c0] sm:$0xff]
        %v430 = vld [vmem:[%s1 + $0x2c8] sm:$0xff]
        %v431 = vld [vmem:[%s1 + $0x2d0] sm:$0xff]
        %v432 = vld [vmem:[%s1 + $0x2d8] sm:$0xff]
        %v433 = vld [vmem:[%s1 + $0x2e0] sm:$0xff]
        %v434 = vld [vmem:[%s1 + $0x2e8] sm:$0xff]
        %v435 = vld [vmem:[%s1 + $0x2f0] sm:$0xff]
        %v436 = vld [vmem:[%s1 + $0x2f8] sm:$0xff]
        %v437 = vld [vmem:[%s1 + $0x300] sm:$0xff]
        %v438 = vld [vmem:[%s1 + $0x308] sm:$0xff]
        %v439 = vld [vmem:[%s2] sm:$0x1]
        %v441 = vlaneseq
        %v442 = vshrl.u32 %v441, 7
        %v443 = vsub.s32 0, %v442
        %v444 = vrot.slane %v439, %v443
        %vm446 = vcmask 130048
        %v448 = vsel %vm446, %v235, 0
        %v451 = vsel %vm446, %v242, 0
        %v454 = vsel %vm446, %v249, 0
        %v457 = vsel %vm446, %v256, 0
        %v460 = vsel %vm446, %v263, 0
        %v463 = vsel %vm446, %v270, 0
        %v466 = vsel %vm446, %v277, 0
        %v469 = vsel %vm446, %v284, 0
        %v472 = vsel %vm446, %v291, 0
        %v475 = vsel %vm446, %v298, 0
        %v478 = vsel %vm446, %v305, 0
        %v481 = vsel %vm446, %v312, 0
        %v484 = vsel %vm446, %v319, 0
        %v487 = vsel %vm446, %v326, 0
        %v490 = vsel %vm446, %v333, 0
        %v493 = vsel %vm446, %v340, 0
        %495 = vmatprep.subr.mxu0 0.0
        %496 = vmatpush1.msra.mxu0 %v356
        %497 = vmatprep.subr.mxu0 0.0
        %498 = vmatpush1.msra.mxu0 %v355
        %499 = vmatprep.subr.mxu0 0.0
        %500 = vmatpush1.msra.mxu0 %v354
        %501 = vmatprep.subr.mxu0 0.0
        %502 = vmatpush1.msra.mxu0 %v353
        %503 = vmatprep.subr.mxu0 0.0
        %504 = vmatpush1.msra.mxu0 %v352
        %505 = vmatprep.subr.mxu0 0.0
        %506 = vmatpush1.msra.mxu0 %v351
        %507 = vmatprep.subr.mxu0 0.0
        %508 = vmatpush1.msra.mxu0 %v350
        %509 = vmatprep.subr.mxu0 0.0
        %510 = vmatpush1.msra.mxu0 %v349
        %511 = vmatprep.subr.mxu0 0.0
        %512 = vmatpush1.msra.mxu0 %v348
        %513 = vmatprep.subr.mxu0 0.0
        %514 = vmatpush1.msra.mxu0 %v347
        %515 = vmatprep.subr.mxu0 0.0
        %516 = vmatpush1.msra.mxu0 %v346
        %517 = vmatprep.subr.mxu0 0.0
        %518 = vmatpush1.msra.mxu0 %v345
        %519 = vmatprep.subr.mxu0 0.0
        %520 = vmatpush1.msra.mxu0 %v344
        %521 = vmatprep.subr.mxu0 0.0
        %522 = vmatpush1.msra.mxu0 %v343
        %523 = vmatprep.subr.mxu0 0.0
        %524 = vmatpush1.msra.mxu0 %v342
        %525 = vmatprep.subr.mxu0 0.0
        %526 = vmatpush1.msra.mxu0 %v341
        %527 = vmatprep.subr.mxu0 0.0
        %528 = vmatpush2.msra.mxu0 %v372
        %529 = vmatprep.subr.mxu0 0.0
        %530 = vmatpush2.msra.mxu0 %v371
        %531 = vmatprep.subr.mxu0 0.0
        %532 = vmatpush2.msra.mxu0 %v370
        %533 = vmatprep.subr.mxu0 0.0
        %534 = vmatpush2.msra.mxu0 %v369
        %535 = vmatprep.subr.mxu0 0.0
        %536 = vmatpush2.msra.mxu0 %v368
        %537 = vmatprep.subr.mxu0 0.0
        %538 = vmatpush2.msra.mxu0 %v367
        %539 = vmatprep.subr.mxu0 0.0
        %540 = vmatpush2.msra.mxu0 %v366
        %541 = vmatprep.subr.mxu0 0.0
        %542 = vmatpush2.msra.mxu0 %v365
        %543 = vmatprep.subr.mxu0 0.0
        %544 = vmatpush2.msra.mxu0 %v364
        %545 = vmatprep.subr.mxu0 0.0
        %546 = vmatpush2.msra.mxu0 %v363
        %547 = vmatprep.subr.mxu0 0.0
        %548 = vmatpush2.msra.mxu0 %v362
        %549 = vmatprep.subr.mxu0 0.0
        %550 = vmatpush2.msra.mxu0 %v361
        %551 = vmatprep.subr.mxu0 0.0
        %552 = vmatpush2.msra.mxu0 %v360
        %553 = vmatprep.subr.mxu0 0.0
        %554 = vmatpush2.msra.mxu0 %v359
        %555 = vmatprep.subr.mxu0 0.0
        %556 = vmatpush2.msra.mxu0 %v358
        %557 = vmatprep.subr.mxu0 0.0
        %558 = vmatpush2.msra.mxu0 %v357
        %559 = vmatprep.mubr.f32.mxu0 %v230
        %560 = vmatmul.mubr.f32.gmra.mxu0 %v229
        %v561 = vpop.f32.mrf.mxu0
        %v562 = vadd.f32 %v444, %v561
        %v563 = vpop.f32.mrf.mxu0
        %564 = vmatprep.mubr.f32.mxu0 %v237
        %565 = vmatmul.mubr.f32.gmra.mxu0 %v236
        %v566 = vpop.f32.mrf.mxu0
        %v567 = vadd.f32 %v444, %v566
        %v568 = vpop.f32.mrf.mxu0
        %569 = vmatprep.mubr.f32.mxu0 %v244
        %570 = vmatmul.mubr.f32.gmra.mxu0 %v243
        %v571 = vpop.f32.mrf.mxu0
        %v572 = vadd.f32 %v444, %v571
        %v573 = vpop.f32.mrf.mxu0
        %574 = vmatprep.mubr.f32.mxu0 %v251
        %575 = vmatmul.mubr.f32.gmra.mxu0 %v250
        %v576 = vpop.f32.mrf.mxu0
        %v577 = vadd.f32 %v444, %v576
        %v578 = vpop.f32.mrf.mxu0
        %579 = vmatprep.mubr.f32.mxu0 %v258
        %580 = vmatmul.mubr.f32.gmra.mxu0 %v257
        %v581 = vpop.f32.mrf.mxu0
        %v582 = vadd.f32 %v444, %v581
        %v583 = vpop.f32.mrf.mxu0
        %584 = vmatprep.mubr.f32.mxu0 %v265
        %585 = vmatmul.mubr.f32.gmra.mxu0 %v264
        %v586 = vpop.f32.mrf.mxu0
        %v587 = vadd.f32 %v444, %v586
        %v588 = vpop.f32.mrf.mxu0
        %589 = vmatprep.mubr.f32.mxu0 %v272
        %590 = vmatmul.mubr.f32.gmra.mxu0 %v271
        %v591 = vpop.f32.mrf.mxu0
        %v592 = vadd.f32 %v444, %v591
        %v593 = vpop.f32.mrf.mxu0
        %594 = vmatprep.mubr.f32.mxu0 %v279
        %595 = vmatmul.mubr.f32.gmra.mxu0 %v278
        %v596 = vpop.f32.mrf.mxu0
        %v597 = vadd.f32 %v444, %v596
        %v598 = vpop.f32.mrf.mxu0
        %599 = vmatprep.mubr.f32.mxu0 %v286
        %600 = vmatmul.mubr.f32.gmra.mxu0 %v285
        %v601 = vpop.f32.mrf.mxu0
        %v602 = vadd.f32 %v444, %v601
        %v603 = vpop.f32.mrf.mxu0
        %604 = vmatprep.mubr.f32.mxu0 %v293
        %605 = vmatmul.mubr.f32.gmra.mxu0 %v292
        %v606 = vpop.f32.mrf.mxu0
        %v607 = vadd.f32 %v444, %v606
        %v608 = vpop.f32.mrf.mxu0
        %609 = vmatprep.mubr.f32.mxu0 %v300
        %610 = vmatmul.mubr.f32.gmra.mxu0 %v299
        %v611 = vpop.f32.mrf.mxu0
        %v612 = vadd.f32 %v444, %v611
        %v613 = vpop.f32.mrf.mxu0
        %614 = vmatprep.mubr.f32.mxu0 %v307
        %615 = vmatmul.mubr.f32.gmra.mxu0 %v306
        %v616 = vpop.f32.mrf.mxu0
        %v617 = vadd.f32 %v444, %v616
        %v618 = vpop.f32.mrf.mxu0
        %619 = vmatprep.mubr.f32.mxu0 %v314
        %620 = vmatmul.mubr.f32.gmra.mxu0 %v313
        %v621 = vpop.f32.mrf.mxu0
        %v622 = vadd.f32 %v444, %v621
        %v623 = vpop.f32.mrf.mxu0
        %624 = vmatprep.mubr.f32.mxu0 %v321
        %625 = vmatmul.mubr.f32.gmra.mxu0 %v320
        %v626 = vpop.f32.mrf.mxu0
        %v627 = vadd.f32 %v444, %v626
        %v628 = vpop.f32.mrf.mxu0
        %629 = vmatprep.mubr.f32.mxu0 %v328
        %630 = vmatmul.mubr.f32.gmra.mxu0 %v327
        %v631 = vpop.f32.mrf.mxu0
        %v632 = vadd.f32 %v444, %v631
        %v633 = vpop.f32.mrf.mxu0
        %634 = vmatprep.mubr.f32.mxu0 %v335
        %635 = vmatmul.mubr.f32.gmra.mxu0 %v334
        %v636 = vpop.f32.mrf.mxu0
        %v637 = vadd.f32 %v444, %v636
        %v638 = vpop.f32.mrf.mxu0
        %639 = vdwg.mxu0
        %640 = vmatprep.subr.mxu0 0.0
        %641 = vmatpush1.msra.mxu0 %v388
        %642 = vmatprep.subr.mxu0 0.0
        %643 = vmatpush1.msra.mxu0 %v387
        %644 = vmatprep.subr.mxu0 0.0
        %645 = vmatpush1.msra.mxu0 %v386
        %646 = vmatprep.subr.mxu0 0.0
        %647 = vmatpush1.msra.mxu0 %v385
        %648 = vmatprep.subr.mxu0 0.0
        %649 = vmatpush1.msra.mxu0 %v384
        %650 = vmatprep.subr.mxu0 0.0
        %651 = vmatpush1.msra.mxu0 %v383
        %652 = vmatprep.subr.mxu0 0.0
        %653 = vmatpush1.msra.mxu0 %v382
        %654 = vmatprep.subr.mxu0 0.0
        %655 = vmatpush1.msra.mxu0 %v381
        %656 = vmatprep.subr.mxu0 0.0
        %657 = vmatpush1.msra.mxu0 %v380
        %658 = vmatprep.subr.mxu0 0.0
        %659 = vmatpush1.msra.mxu0 %v379
        %660 = vmatprep.subr.mxu0 0.0
        %661 = vmatpush1.msra.mxu0 %v378
        %662 = vmatprep.subr.mxu0 0.0
        %663 = vmatpush1.msra.mxu0 %v377
        %664 = vmatprep.subr.mxu0 0.0
        %665 = vmatpush1.msra.mxu0 %v376
        %666 = vmatprep.subr.mxu0 0.0
        %667 = vmatpush1.msra.mxu0 %v375
        %668 = vmatprep.subr.mxu0 0.0
        %669 = vmatpush1.msra.mxu0 %v374
        %670 = vmatprep.subr.mxu0 0.0
        %671 = vmatpush1.msra.mxu0 %v373
        %672 = vmatprep.subr.mxu0 0.0
        %673 = vmatpush2.msra.mxu0 %v404
        %674 = vmatprep.subr.mxu0 0.0
        %675 = vmatpush2.msra.mxu0 %v403
        %676 = vmatprep.subr.mxu0 0.0
        %677 = vmatpush2.msra.mxu0 %v402
        %678 = vmatprep.subr.mxu0 0.0
        %679 = vmatpush2.msra.mxu0 %v401
        %680 = vmatprep.subr.mxu0 0.0
        %681 = vmatpush2.msra.mxu0 %v400
        %682 = vmatprep.subr.mxu0 0.0
        %683 = vmatpush2.msra.mxu0 %v399
        %684 = vmatprep.subr.mxu0 0.0
        %685 = vmatpush2.msra.mxu0 %v398
        %686 = vmatprep.subr.mxu0 0.0
        %687 = vmatpush2.msra.mxu0 %v397
        %688 = vmatprep.subr.mxu0 0.0
        %689 = vmatpush2.msra.mxu0 %v396
        %690 = vmatprep.subr.mxu0 0.0
        %691 = vmatpush2.msra.mxu0 %v395
        %692 = vmatprep.subr.mxu0 0.0
        %693 = vmatpush2.msra.mxu0 %v394
        %694 = vmatprep.subr.mxu0 0.0
        %695 = vmatpush2.msra.mxu0 %v393
        %696 = vmatprep.subr.mxu0 0.0
        %697 = vmatpush2.msra.mxu0 %v392
        %698 = vmatprep.subr.mxu0 0.0
        %699 = vmatpush2.msra.mxu0 %v391
        %700 = vmatprep.subr.mxu0 0.0
        %701 = vmatpush2.msra.mxu0 %v390
        %702 = vmatprep.subr.mxu0 0.0
        %703 = vmatpush2.msra.mxu0 %v389
        %704 = vmatprep.mubr.f32.mxu0 %v232
        %705 = vmatmul.mubr.f32.gmra.mxu0 %v231
        %v706 = vpop.f32.mrf.mxu0
        %v707 = vadd.f32 %v562, %v706
        %v708 = vpop.f32.mrf.mxu0
        %709 = vmatprep.mubr.f32.mxu0 %v239
        %710 = vmatmul.mubr.f32.gmra.mxu0 %v238
        %v711 = vpop.f32.mrf.mxu0
        %v712 = vadd.f32 %v567, %v711
        %v713 = vpop.f32.mrf.mxu0
        %714 = vmatprep.mubr.f32.mxu0 %v246
        %715 = vmatmul.mubr.f32.gmra.mxu0 %v245
        %v716 = vpop.f32.mrf.mxu0
        %v717 = vadd.f32 %v572, %v716
        %v718 = vpop.f32.mrf.mxu0
        %719 = vmatprep.mubr.f32.mxu0 %v253
        %720 = vmatmul.mubr.f32.gmra.mxu0 %v252
        %v721 = vpop.f32.mrf.mxu0
        %v722 = vadd.f32 %v577, %v721
        %v723 = vpop.f32.mrf.mxu0
        %724 = vmatprep.mubr.f32.mxu0 %v260
        %725 = vmatmul.mubr.f32.gmra.mxu0 %v259
        %v726 = vpop.f32.mrf.mxu0
        %v727 = vadd.f32 %v582, %v726
        %v728 = vpop.f32.mrf.mxu0
        %729 = vmatprep.mubr.f32.mxu0 %v267
        %730 = vmatmul.mubr.f32.gmra.mxu0 %v266
        %v731 = vpop.f32.mrf.mxu0
        %v732 = vadd.f32 %v587, %v731
        %v733 = vpop.f32.mrf.mxu0
        %734 = vmatprep.mubr.f32.mxu0 %v274
        %735 = vmatmul.mubr.f32.gmra.mxu0 %v273
        %v736 = vpop.f32.mrf.mxu0
        %v737 = vadd.f32 %v592, %v736
        %v738 = vpop.f32.mrf.mxu0
        %739 = vmatprep.mubr.f32.mxu0 %v281
        %740 = vmatmul.mubr.f32.gmra.mxu0 %v280
        %v741 = vpop.f32.mrf.mxu0
        %v742 = vadd.f32 %v597, %v741
        %v743 = vpop.f32.mrf.mxu0
        %744 = vmatprep.mubr.f32.mxu0 %v288
        %745 = vmatmul.mubr.f32.gmra.mxu0 %v287
        %v746 = vpop.f32.mrf.mxu0
        %v747 = vadd.f32 %v602, %v746
        %v748 = vpop.f32.mrf.mxu0
        %749 = vmatprep.mubr.f32.mxu0 %v295
        %750 = vmatmul.mubr.f32.gmra.mxu0 %v294
        %v751 = vpop.f32.mrf.mxu0
        %v752 = vadd.f32 %v607, %v751
        %v753 = vpop.f32.mrf.mxu0
        %754 = vmatprep.mubr.f32.mxu0 %v302
        %755 = vmatmul.mubr.f32.gmra.mxu0 %v301
        %v756 = vpop.f32.mrf.mxu0
        %v757 = vadd.f32 %v612, %v756
        %v758 = vpop.f32.mrf.mxu0
        %759 = vmatprep.mubr.f32.mxu0 %v309
        %760 = vmatmul.mubr.f32.gmra.mxu0 %v308
        %v761 = vpop.f32.mrf.mxu0
        %v762 = vadd.f32 %v617, %v761
        %v763 = vpop.f32.mrf.mxu0
        %764 = vmatprep.mubr.f32.mxu0 %v316
        %765 = vmatmul.mubr.f32.gmra.mxu0 %v315
        %v766 = vpop.f32.mrf.mxu0
        %v767 = vadd.f32 %v622, %v766
        %v768 = vpop.f32.mrf.mxu0
        %769 = vmatprep.mubr.f32.mxu0 %v323
        %770 = vmatmul.mubr.f32.gmra.mxu0 %v322
        %v771 = vpop.f32.mrf.mxu0
        %v772 = vadd.f32 %v627, %v771
        %v773 = vpop.f32.mrf.mxu0
        %774 = vmatprep.mubr.f32.mxu0 %v330
        %775 = vmatmul.mubr.f32.gmra.mxu0 %v329
        %v776 = vpop.f32.mrf.mxu0
        %v777 = vadd.f32 %v632, %v776
        %v778 = vpop.f32.mrf.mxu0
        %779 = vmatprep.mubr.f32.mxu0 %v337
        %780 = vmatmul.mubr.f32.gmra.mxu0 %v336
        %v781 = vpop.f32.mrf.mxu0
        %v782 = vadd.f32 %v637, %v781
        %v783 = vpop.f32.mrf.mxu0
        %784 = vdwg.mxu0
        %785 = vmatprep.subr.mxu0 0.0
        %786 = vmatpush1.msra.mxu0 %v420
        %787 = vmatprep.subr.mxu0 0.0
        %788 = vmatpush1.msra.mxu0 %v419
        %789 = vmatprep.subr.mxu0 0.0
        %790 = vmatpush1.msra.mxu0 %v418
        %791 = vmatprep.subr.mxu0 0.0
        %792 = vmatpush1.msra.mxu0 %v417
        %793 = vmatprep.subr.mxu0 0.0
        %794 = vmatpush1.msra.mxu0 %v416
        %795 = vmatprep.subr.mxu0 0.0
        %796 = vmatpush1.msra.mxu0 %v415
        %797 = vmatprep.subr.mxu0 0.0
        %798 = vmatpush1.msra.mxu0 %v414
        %799 = vmatprep.subr.mxu0 0.0
        %800 = vmatpush1.msra.mxu0 %v413
        %801 = vmatprep.subr.mxu0 0.0
        %802 = vmatpush1.msra.mxu0 %v412
        %803 = vmatprep.subr.mxu0 0.0
        %804 = vmatpush1.msra.mxu0 %v411
        %805 = vmatprep.subr.mxu0 0.0
        %806 = vmatpush1.msra.mxu0 %v410
        %807 = vmatprep.subr.mxu0 0.0
        %808 = vmatpush1.msra.mxu0 %v409
        %809 = vmatprep.subr.mxu0 0.0
        %810 = vmatpush1.msra.mxu0 %v408
        %811 = vmatprep.subr.mxu0 0.0
        %812 = vmatpush1.msra.mxu0 %v407
        %813 = vmatprep.subr.mxu0 0.0
        %814 = vmatpush1.msra.mxu0 %v406
        %815 = vmatprep.subr.mxu0 0.0
        %816 = vmatpush1.msra.mxu0 %v405
        %817 = vmatprep.subr.mxu0 0.0
        %818 = vmatpush2.msra.mxu0 %v436
        %819 = vmatprep.subr.mxu0 0.0
        %820 = vmatpush2.msra.mxu0 %v435
        %821 = vmatprep.subr.mxu0 0.0
        %822 = vmatpush2.msra.mxu0 %v434
        %823 = vmatprep.subr.mxu0 0.0
        %824 = vmatpush2.msra.mxu0 %v433
        %825 = vmatprep.subr.mxu0 0.0
        %826 = vmatpush2.msra.mxu0 %v432
        %827 = vmatprep.subr.mxu0 0.0
        %828 = vmatpush2.msra.mxu0 %v431
        %829 = vmatprep.subr.mxu0 0.0
        %830 = vmatpush2.msra.mxu0 %v430
        %831 = vmatprep.subr.mxu0 0.0
        %832 = vmatpush2.msra.mxu0 %v429
        %833 = vmatprep.subr.mxu0 0.0
        %834 = vmatpush2.msra.mxu0 %v428
        %835 = vmatprep.subr.mxu0 0.0
        %836 = vmatpush2.msra.mxu0 %v427
        %837 = vmatprep.subr.mxu0 0.0
        %838 = vmatpush2.msra.mxu0 %v426
        %839 = vmatprep.subr.mxu0 0.0
        %840 = vmatpush2.msra.mxu0 %v425
        %841 = vmatprep.subr.mxu0 0.0
        %842 = vmatpush2.msra.mxu0 %v424
        %843 = vmatprep.subr.mxu0 0.0
        %844 = vmatpush2.msra.mxu0 %v423
        %845 = vmatprep.subr.mxu0 0.0
        %846 = vmatpush2.msra.mxu0 %v422
        %847 = vmatprep.subr.mxu0 0.0
        %848 = vmatpush2.msra.mxu0 %v421
        %849 = vmatprep.mubr.f32.mxu0 %v234
        %850 = vmatmul.mubr.f32.gmra.mxu0 %v233
        %v851 = vpop.f32.mrf.mxu0
        %v852 = vadd.f32 %v707, %v851
        %v853 = vpop.f32.mrf.mxu0
        %854 = vmatprep.mubr.f32.mxu0 %v241
        %855 = vmatmul.mubr.f32.gmra.mxu0 %v240
        %v856 = vpop.f32.mrf.mxu0
        %v857 = vadd.f32 %v712, %v856
        %v858 = vpop.f32.mrf.mxu0
        %859 = vmatprep.mubr.f32.mxu0 %v248
        %860 = vmatmul.mubr.f32.gmra.mxu0 %v247
        %v861 = vpop.f32.mrf.mxu0
        %v862 = vadd.f32 %v717, %v861
        %v863 = vpop.f32.mrf.mxu0
        %864 = vmatprep.mubr.f32.mxu0 %v255
        %865 = vmatmul.mubr.f32.gmra.mxu0 %v254
        %v866 = vpop.f32.mrf.mxu0
        %v867 = vadd.f32 %v722, %v866
        %v868 = vpop.f32.mrf.mxu0
        %869 = vmatprep.mubr.f32.mxu0 %v262
        %870 = vmatmul.mubr.f32.gmra.mxu0 %v261
        %v871 = vpop.f32.mrf.mxu0
        %v872 = vadd.f32 %v727, %v871
        %v873 = vpop.f32.mrf.mxu0
        %874 = vmatprep.mubr.f32.mxu0 %v269
        %875 = vmatmul.mubr.f32.gmra.mxu0 %v268
        %v876 = vpop.f32.mrf.mxu0
        %v877 = vadd.f32 %v732, %v876
        %v878 = vpop.f32.mrf.mxu0
        %879 = vmatprep.mubr.f32.mxu0 %v276
        %880 = vmatmul.mubr.f32.gmra.mxu0 %v275
        %v881 = vpop.f32.mrf.mxu0
        %v882 = vadd.f32 %v737, %v881
        %v883 = vpop.f32.mrf.mxu0
        %884 = vmatprep.mubr.f32.mxu0 %v283
        %885 = vmatmul.mubr.f32.gmra.mxu0 %v282
        %v886 = vpop.f32.mrf.mxu0
        %v887 = vadd.f32 %v742, %v886
        %v888 = vpop.f32.mrf.mxu0
        %889 = vmatprep.mubr.f32.mxu0 %v290
        %890 = vmatmul.mubr.f32.gmra.mxu0 %v289
        %v891 = vpop.f32.mrf.mxu0
        %v892 = vadd.f32 %v747, %v891
        %v893 = vpop.f32.mrf.mxu0
        %894 = vmatprep.mubr.f32.mxu0 %v297
        %895 = vmatmul.mubr.f32.gmra.mxu0 %v296
        %v896 = vpop.f32.mrf.mxu0
        %v897 = vadd.f32 %v752, %v896
        %v898 = vpop.f32.mrf.mxu0
        %899 = vmatprep.mubr.f32.mxu0 %v304
        %900 = vmatmul.mubr.f32.gmra.mxu0 %v303
        %v901 = vpop.f32.mrf.mxu0
        %v902 = vadd.f32 %v757, %v901
        %v903 = vpop.f32.mrf.mxu0
        %904 = vmatprep.mubr.f32.mxu0 %v311
        %905 = vmatmul.mubr.f32.gmra.mxu0 %v310
        %v906 = vpop.f32.mrf.mxu0
        %v907 = vadd.f32 %v762, %v906
        %v908 = vpop.f32.mrf.mxu0
        %909 = vmatprep.mubr.f32.mxu0 %v318
        %910 = vmatmul.mubr.f32.gmra.mxu0 %v317
        %v911 = vpop.f32.mrf.mxu0
        %v912 = vadd.f32 %v767, %v911
        %v913 = vpop.f32.mrf.mxu0
        %914 = vmatprep.mubr.f32.mxu0 %v325
        %915 = vmatmul.mubr.f32.gmra.mxu0 %v324
        %v916 = vpop.f32.mrf.mxu0
        %v917 = vadd.f32 %v772, %v916
        %v918 = vpop.f32.mrf.mxu0
        %919 = vmatprep.mubr.f32.mxu0 %v332
        %920 = vmatmul.mubr.f32.gmra.mxu0 %v331
        %v921 = vpop.f32.mrf.mxu0
        %v922 = vadd.f32 %v777, %v921
        %v923 = vpop.f32.mrf.mxu0
        %924 = vmatprep.mubr.f32.mxu0 %v339
        %925 = vmatmul.mubr.f32.gmra.mxu0 %v338
        %v926 = vpop.f32.mrf.mxu0
        %v927 = vadd.f32 %v782, %v926
        %v928 = vpop.f32.mrf.mxu0
        %929 = vdwg.mxu0
        %930 = vmatprep.subr.mxu0 0.0
        %931 = vmatpush1.msra.mxu0 0.0
        %932 = vmatprep.subr.mxu0 0.0
        %933 = vmatpush1.msra.mxu0 0.0
        %934 = vmatprep.subr.mxu0 0.0
        %935 = vmatpush1.msra.mxu0 0.0
        %936 = vmatprep.subr.mxu0 0.0
        %937 = vmatpush1.msra.mxu0 0.0
        %938 = vmatprep.subr.mxu0 0.0
        %939 = vmatpush1.msra.mxu0 0.0
        %940 = vmatprep.subr.mxu0 0.0
        %941 = vmatpush1.msra.mxu0 0.0
        %942 = vmatprep.subr.mxu0 0.0
        %943 = vmatpush1.msra.mxu0 0.0
        %944 = vmatprep.subr.mxu0 0.0
        %945 = vmatpush1.msra.mxu0 0.0
        %946 = vmatprep.subr.mxu0 0.0
        %947 = vmatpush1.msra.mxu0 0.0
        %948 = vmatprep.subr.mxu0 0.0
        %949 = vmatpush1.msra.mxu0 0.0
        %950 = vmatprep.subr.mxu0 0.0
        %951 = vmatpush1.msra.mxu0 0.0
        %952 = vmatprep.subr.mxu0 0.0
        %953 = vmatpush1.msra.mxu0 0.0
        %954 = vmatprep.subr.mxu0 0.0
        %955 = vmatpush1.msra.mxu0 0.0
        %956 = vmatprep.subr.mxu0 0.0
        %957 = vmatpush1.msra.mxu0 0.0
        %958 = vmatprep.subr.mxu0 0.0
        %959 = vmatpush1.msra.mxu0 %v438
        %960 = vmatprep.subr.mxu0 0.0
        %961 = vmatpush1.msra.mxu0 %v437
        %962 = vmatprep.subr.mxu0 0.0
        %963 = vmatpush2.msra.mxu0 0.0
        %964 = vmatprep.subr.mxu0 0.0
        %965 = vmatpush2.msra.mxu0 0.0
        %966 = vmatprep.subr.mxu0 0.0
        %967 = vmatpush2.msra.mxu0 0.0
        %968 = vmatprep.subr.mxu0 0.0
        %969 = vmatpush2.msra.mxu0 0.0
        %970 = vmatprep.subr.mxu0 0.0
        %971 = vmatpush2.msra.mxu0 0.0
        %972 = vmatprep.subr.mxu0 0.0
        %973 = vmatpush2.msra.mxu0 0.0
        %974 = vmatprep.subr.mxu0 0.0
        %975 = vmatpush2.msra.mxu0 0.0
        %976 = vmatprep.subr.mxu0 0.0
        %977 = vmatpush2.msra.mxu0 0.0
        %978 = vmatprep.subr.mxu0 0.0
        %979 = vmatpush2.msra.mxu0 0.0
        %980 = vmatprep.subr.mxu0 0.0
        %981 = vmatpush2.msra.mxu0 0.0
        %982 = vmatprep.subr.mxu0 0.0
        %983 = vmatpush2.msra.mxu0 0.0
        %984 = vmatprep.subr.mxu0 0.0
        %985 = vmatpush2.msra.mxu0 0.0
        %986 = vmatprep.subr.mxu0 0.0
        %987 = vmatpush2.msra.mxu0 0.0
        %988 = vmatprep.subr.mxu0 0.0
        %989 = vmatpush2.msra.mxu0 0.0
        %990 = vmatprep.subr.mxu0 0.0
        %991 = vmatpush2.msra.mxu0 0.0
        %992 = vmatprep.subr.mxu0 0.0
        %993 = vmatpush2.msra.mxu0 0.0
        %994 = vmatprep.mubr.f32.mxu0 0.0
        %995 = vmatmul.mubr.f32.gmra.mxu0 %v448
        %v996 = vpop.f32.mrf.mxu0
        %v997 = vadd.f32 %v852, %v996
        %v998 = vpop.f32.mrf.mxu0
        %999 = vmatprep.mubr.f32.mxu0 0.0
        %1000 = vmatmul.mubr.f32.gmra.mxu0 %v451
        %v1001 = vpop.f32.mrf.mxu0
        %v1002 = vadd.f32 %v857, %v1001
        %v1003 = vpop.f32.mrf.mxu0
        %1004 = vmatprep.mubr.f32.mxu0 0.0
        %1005 = vmatmul.mubr.f32.gmra.mxu0 %v454
        %v1006 = vpop.f32.mrf.mxu0
        %v1007 = vadd.f32 %v862, %v1006
        %v1008 = vpop.f32.mrf.mxu0
        %1009 = vmatprep.mubr.f32.mxu0 0.0
        %1010 = vmatmul.mubr.f32.gmra.mxu0 %v457
        %v1011 = vpop.f32.mrf.mxu0
        %v1012 = vadd.f32 %v867, %v1011
        %v1013 = vpop.f32.mrf.mxu0
        %1014 = vmatprep.mubr.f32.mxu0 0.0
        %1015 = vmatmul.mubr.f32.gmra.mxu0 %v460
        %v1016 = vpop.f32.mrf.mxu0
        %v1017 = vadd.f32 %v872, %v1016
        %v1018 = vpop.f32.mrf.mxu0
        %1019 = vmatprep.mubr.f32.mxu0 0.0
        %1020 = vmatmul.mubr.f32.gmra.mxu0 %v463
        %v1021 = vpop.f32.mrf.mxu0
        %v1022 = vadd.f32 %v877, %v1021
        %v1023 = vpop.f32.mrf.mxu0
        %1024 = vmatprep.mubr.f32.mxu0 0.0
        %1025 = vmatmul.mubr.f32.gmra.mxu0 %v466
        %v1026 = vpop.f32.mrf.mxu0
        %v1027 = vadd.f32 %v882, %v1026
        %v1028 = vpop.f32.mrf.mxu0
        %1029 = vmatprep.mubr.f32.mxu0 0.0
        %1030 = vmatmul.mubr.f32.gmra.mxu0 %v469
        %v1031 = vpop.f32.mrf.mxu0
        %v1032 = vadd.f32 %v887, %v1031
        %v1033 = vpop.f32.mrf.mxu0
        %1034 = vmatprep.mubr.f32.mxu0 0.0
        %1035 = vmatmul.mubr.f32.gmra.mxu0 %v472
        %v1036 = vpop.f32.mrf.mxu0
        %v1037 = vadd.f32 %v892, %v1036
        %v1038 = vpop.f32.mrf.mxu0
        %1039 = vmatprep.mubr.f32.mxu0 0.0
        %1040 = vmatmul.mubr.f32.gmra.mxu0 %v475
        %v1041 = vpop.f32.mrf.mxu0
        %v1042 = vadd.f32 %v897, %v1041
        %v1043 = vpop.f32.mrf.mxu0
        %1044 = vmatprep.mubr.f32.mxu0 0.0
        %1045 = vmatmul.mubr.f32.gmra.mxu0 %v478
        %v1046 = vpop.f32.mrf.mxu0
        %v1047 = vadd.f32 %v902, %v1046
        %v1048 = vpop.f32.mrf.mxu0
        %1049 = vmatprep.mubr.f32.mxu0 0.0
        %1050 = vmatmul.mubr.f32.gmra.mxu0 %v481
        %v1051 = vpop.f32.mrf.mxu0
        %v1052 = vadd.f32 %v907, %v1051
        %v1053 = vpop.f32.mrf.mxu0
        %1054 = vmatprep.mubr.f32.mxu0 0.0
        %1055 = vmatmul.mubr.f32.gmra.mxu0 %v484
        %v1056 = vpop.f32.mrf.mxu0
        %v1057 = vadd.f32 %v912, %v1056
        %v1058 = vpop.f32.mrf.mxu0
        %1059 = vmatprep.mubr.f32.mxu0 0.0
        %1060 = vmatmul.mubr.f32.gmra.mxu0 %v487
        %v1061 = vpop.f32.mrf.mxu0
        %v1062 = vadd.f32 %v917, %v1061
        %v1063 = vpop.f32.mrf.mxu0
        %1064 = vmatprep.mubr.f32.mxu0 0.0
        %1065 = vmatmul.mubr.f32.gmra.mxu0 %v490
        %v1066 = vpop.f32.mrf.mxu0
        %v1067 = vadd.f32 %v922, %v1066
        %v1068 = vpop.f32.mrf.mxu0
        %1069 = vmatprep.mubr.f32.mxu0 0.0
        %1070 = vmatmul.mubr.f32.gmra.mxu0 %v493
        %v1071 = vpop.f32.mrf.mxu0
        %v1072 = vadd.f32 %v927, %v1071
        %v1073 = vpop.f32.mrf.mxu0
        %1074 = vdwg.mxu0
        %v1075 = vmax.f32 %v997, 0.0
        %v1076 = vmax.f32 %v1002, 0.0
        %v1077 = vmax.f32 %v1007, 0.0
        %v1078 = vmax.f32 %v1012, 0.0
        %v1079 = vmax.f32 %v1017, 0.0
        %v1080 = vmax.f32 %v1022, 0.0
        %v1081 = vmax.f32 %v1027, 0.0
        %v1082 = vmax.f32 %v1032, 0.0
        %v1083 = vmax.f32 %v1037, 0.0
        %v1084 = vmax.f32 %v1042, 0.0
        %v1085 = vmax.f32 %v1047, 0.0
        %v1086 = vmax.f32 %v1052, 0.0
        %v1087 = vmax.f32 %v1057, 0.0
        %v1088 = vmax.f32 %v1062, 0.0
        %v1089 = vmax.f32 %v1067, 0.0
        %v1090 = vmax.f32 %v1072, 0.0
        %v1091 = vld [vmem:[%s3] sm:$0xff]
        %v1092 = vld [vmem:[%s3 + $0x8] sm:$0xff]
        %v1093 = vld [vmem:[%s3 + $0x10] sm:$0xff]
        %v1094 = vld [vmem:[%s3 + $0x18] sm:$0xff]
        %v1095 = vld [vmem:[%s3 + $0x20] sm:$0xff]
        %v1096 = vld [vmem:[%s3 + $0x28] sm:$0xff]
        %v1097 = vld [vmem:[%s3 + $0x30] sm:$0xff]
        %v1098 = vld [vmem:[%s3 + $0x38] sm:$0xff]
        %v1099 = vld [vmem:[%s3 + $0x40] sm:$0xff]
        %v1100 = vld [vmem:[%s3 + $0x48] sm:$0xff]
        %v1101 = vld [vmem:[%s3 + $0x50] sm:$0xff]
        %v1102 = vld [vmem:[%s3 + $0x58] sm:$0xff]
        %v1103 = vld [vmem:[%s3 + $0x60] sm:$0xff]
        %v1104 = vld [vmem:[%s3 + $0x68] sm:$0xff]
        %v1105 = vld [vmem:[%s3 + $0x70] sm:$0xff]
        %v1106 = vld [vmem:[%s3 + $0x78] sm:$0xff]
        %v1107 = vld [vmem:[%s4] sm:$0x1]
        %v1109 = vlaneseq
        %v1110 = vshrl.u32 %v1109, 7
        %v1111 = vsub.s32 0, %v1110
        %v1112 = vrot.slane %v1107, %v1111
        %1114 = vmatprep.subr.mxu0 0.0
        %1115 = vmatpush1.msra.mxu0 %v1106
        %1116 = vmatprep.subr.mxu0 0.0
        %1117 = vmatpush1.msra.mxu0 %v1105
        %1118 = vmatprep.subr.mxu0 0.0
        %1119 = vmatpush1.msra.mxu0 %v1104
        %1120 = vmatprep.subr.mxu0 0.0
        %1121 = vmatpush1.msra.mxu0 %v1103
        %1122 = vmatprep.subr.mxu0 0.0
        %1123 = vmatpush1.msra.mxu0 %v1102
        %1124 = vmatprep.subr.mxu0 0.0
        %1125 = vmatpush1.msra.mxu0 %v1101
        %1126 = vmatprep.subr.mxu0 0.0
        %1127 = vmatpush1.msra.mxu0 %v1100
        %1128 = vmatprep.subr.mxu0 0.0
        %1129 = vmatpush1.msra.mxu0 %v1099
        %1130 = vmatprep.subr.mxu0 0.0
        %1131 = vmatpush1.msra.mxu0 %v1098
        %1132 = vmatprep.subr.mxu0 0.0
        %1133 = vmatpush1.msra.mxu0 %v1097
        %1134 = vmatprep.subr.mxu0 0.0
        %1135 = vmatpush1.msra.mxu0 %v1096
        %1136 = vmatprep.subr.mxu0 0.0
        %1137 = vmatpush1.msra.mxu0 %v1095
        %1138 = vmatprep.subr.mxu0 0.0
        %1139 = vmatpush1.msra.mxu0 %v1094
        %1140 = vmatprep.subr.mxu0 0.0
        %1141 = vmatpush1.msra.mxu0 %v1093
        %1142 = vmatprep.subr.mxu0 0.0
        %1143 = vmatpush1.msra.mxu0 %v1092
        %1144 = vmatprep.subr.mxu0 0.0
        %1145 = vmatpush1.msra.mxu0 %v1091
        %1146 = vmatprep.subr.mxu0 0.0
        %1147 = vmatpush2.msra.mxu0 0.0
        %1148 = vmatprep.subr.mxu0 0.0
        %1149 = vmatpush2.msra.mxu0 0.0
        %1150 = vmatprep.subr.mxu0 0.0
        %1151 = vmatpush2.msra.mxu0 0.0
        %1152 = vmatprep.subr.mxu0 0.0
        %1153 = vmatpush2.msra.mxu0 0.0
        %1154 = vmatprep.subr.mxu0 0.0
        %1155 = vmatpush2.msra.mxu0 0.0
        %1156 = vmatprep.subr.mxu0 0.0
        %1157 = vmatpush2.msra.mxu0 0.0
        %1158 = vmatprep.subr.mxu0 0.0
        %1159 = vmatpush2.msra.mxu0 0.0
        %1160 = vmatprep.subr.mxu0 0.0
        %1161 = vmatpush2.msra.mxu0 0.0
        %1162 = vmatprep.subr.mxu0 0.0
        %1163 = vmatpush2.msra.mxu0 0.0
        %1164 = vmatprep.subr.mxu0 0.0
        %1165 = vmatpush2.msra.mxu0 0.0
        %1166 = vmatprep.subr.mxu0 0.0
        %1167 = vmatpush2.msra.mxu0 0.0
        %1168 = vmatprep.subr.mxu0 0.0
        %1169 = vmatpush2.msra.mxu0 0.0
        %1170 = vmatprep.subr.mxu0 0.0
        %1171 = vmatpush2.msra.mxu0 0.0
        %1172 = vmatprep.subr.mxu0 0.0
        %1173 = vmatpush2.msra.mxu0 0.0
        %1174 = vmatprep.subr.mxu0 0.0
        %1175 = vmatpush2.msra.mxu0 0.0
        %1176 = vmatprep.subr.mxu0 0.0
        %1177 = vmatpush2.msra.mxu0 0.0
        %1178 = vmatprep.mubr.f32.mxu0 0.0
        %1179 = vmatmul.mubr.f32.gmra.mxu0 %v1075
        %v1180 = vpop.f32.mrf.mxu0
        %v1181 = vadd.f32 %v1112, %v1180
        %v1182 = vpop.f32.mrf.mxu0
        %1183 = vmatprep.mubr.f32.mxu0 0.0
        %1184 = vmatmul.mubr.f32.gmra.mxu0 %v1076
        %v1185 = vpop.f32.mrf.mxu0
        %v1186 = vadd.f32 %v1112, %v1185
        %v1187 = vpop.f32.mrf.mxu0
        %1188 = vmatprep.mubr.f32.mxu0 0.0
        %1189 = vmatmul.mubr.f32.gmra.mxu0 %v1077
        %v1190 = vpop.f32.mrf.mxu0
        %v1191 = vadd.f32 %v1112, %v1190
        %v1192 = vpop.f32.mrf.mxu0
        %1193 = vmatprep.mubr.f32.mxu0 0.0
        %1194 = vmatmul.mubr.f32.gmra.mxu0 %v1078
        %v1195 = vpop.f32.mrf.mxu0
        %v1196 = vadd.f32 %v1112, %v1195
        %v1197 = vpop.f32.mrf.mxu0
        %1198 = vmatprep.mubr.f32.mxu0 0.0
        %1199 = vmatmul.mubr.f32.gmra.mxu0 %v1079
        %v1200 = vpop.f32.mrf.mxu0
        %v1201 = vadd.f32 %v1112, %v1200
        %v1202 = vpop.f32.mrf.mxu0
        %1203 = vmatprep.mubr.f32.mxu0 0.0
        %1204 = vmatmul.mubr.f32.gmra.mxu0 %v1080
        %v1205 = vpop.f32.mrf.mxu0
        %v1206 = vadd.f32 %v1112, %v1205
        %v1207 = vpop.f32.mrf.mxu0
        %1208 = vmatprep.mubr.f32.mxu0 0.0
        %1209 = vmatmul.mubr.f32.gmra.mxu0 %v1081
        %v1210 = vpop.f32.mrf.mxu0
        %v1211 = vadd.f32 %v1112, %v1210
        %v1212 = vpop.f32.mrf.mxu0
        %1213 = vmatprep.mubr.f32.mxu0 0.0
        %1214 = vmatmul.mubr.f32.gmra.mxu0 %v1082
        %v1215 = vpop.f32.mrf.mxu0
        %v1216 = vadd.f32 %v1112, %v1215
        %v1217 = vpop.f32.mrf.mxu0
        %1218 = vmatprep.mubr.f32.mxu0 0.0
        %1219 = vmatmul.mubr.f32.gmra.mxu0 %v1083
        %v1220 = vpop.f32.mrf.mxu0
        %v1221 = vadd.f32 %v1112, %v1220
        %v1222 = vpop.f32.mrf.mxu0
        %1223 = vmatprep.mubr.f32.mxu0 0.0
        %1224 = vmatmul.mubr.f32.gmra.mxu0 %v1084
        %v1225 = vpop.f32.mrf.mxu0
        %v1226 = vadd.f32 %v1112, %v1225
        %v1227 = vpop.f32.mrf.mxu0
        %1228 = vmatprep.mubr.f32.mxu0 0.0
        %1229 = vmatmul.mubr.f32.gmra.mxu0 %v1085
        %v1230 = vpop.f32.mrf.mxu0
        %v1231 = vadd.f32 %v1112, %v1230
        %v1232 = vpop.f32.mrf.mxu0
        %1233 = vmatprep.mubr.f32.mxu0 0.0
        %1234 = vmatmul.mubr.f32.gmra.mxu0 %v1086
        %v1235 = vpop.f32.mrf.mxu0
        %v1236 = vadd.f32 %v1112, %v1235
        %v1237 = vpop.f32.mrf.mxu0
        %1238 = vmatprep.mubr.f32.mxu0 0.0
        %1239 = vmatmul.mubr.f32.gmra.mxu0 %v1087
        %v1240 = vpop.f32.mrf.mxu0
        %v1241 = vadd.f32 %v1112, %v1240
        %v1242 = vpop.f32.mrf.mxu0
        %1243 = vmatprep.mubr.f32.mxu0 0.0
        %1244 = vmatmul.mubr.f32.gmra.mxu0 %v1088
        %v1245 = vpop.f32.mrf.mxu0
        %v1246 = vadd.f32 %v1112, %v1245
        %v1247 = vpop.f32.mrf.mxu0
        %1248 = vmatprep.mubr.f32.mxu0 0.0
        %1249 = vmatmul.mubr.f32.gmra.mxu0 %v1089
        %v1250 = vpop.f32.mrf.mxu0
        %v1251 = vadd.f32 %v1112, %v1250
        %v1252 = vpop.f32.mrf.mxu0
        %1253 = vmatprep.mubr.f32.mxu0 0.0
        %1254 = vmatmul.mubr.f32.gmra.mxu0 %v1090
        %v1255 = vpop.f32.mrf.mxu0
        %v1256 = vadd.f32 %v1112, %v1255
        %v1257 = vpop.f32.mrf.mxu0
        %1258 = vdwg.mxu0
        %1259 = vst [vmem:[%s220] sm:$0xff] %v1181
        %1260 = vst [vmem:[%s220 + $0x8] sm:$0xff] %v1186
        %1261 = vst [vmem:[%s220 + $0x10] sm:$0xff] %v1191
        %1262 = vst [vmem:[%s220 + $0x18] sm:$0xff] %v1196
        %1263 = vst [vmem:[%s220 + $0x20] sm:$0xff] %v1201
        %1264 = vst [vmem:[%s220 + $0x28] sm:$0xff] %v1206
        %1265 = vst [vmem:[%s220 + $0x30] sm:$0xff] %v1211
        %1266 = vst [vmem:[%s220 + $0x38] sm:$0xff] %v1216
        %1267 = vst [vmem:[%s220 + $0x40] sm:$0xff] %v1221
        %1268 = vst [vmem:[%s220 + $0x48] sm:$0xff] %v1226
        %1269 = vst [vmem:[%s220 + $0x50] sm:$0xff] %v1231
        %1270 = vst [vmem:[%s220 + $0x58] sm:$0xff] %v1236
        %1271 = vst [vmem:[%s220 + $0x60] sm:$0xff] %v1241
        %1272 = vst [vmem:[%s220 + $0x68] sm:$0xff] %v1246
        %1273 = vst [vmem:[%s220 + $0x70] sm:$0xff] %v1251
        %1274 = vst [vmem:[%s220 + $0x78] sm:$0xff] %v1256
        %s1275 = sand.u32 %s137, 1
        %s1276 = scalar_lea.sflag [#allocation3], %s1275
        %s1277 = sand.u32 %s137, 1
        %s1278 = smul.addr %s1277, 128
        %s1279 = scalar_lea.vmem [#allocation2], %s1278
        // Predicated region
        $region41: #{tpu_custom_call.1} parent=39 // pred_check
          %p1280 = pneg %p147
        $region42: #{tpu_custom_call.1} parent=39 // pred_check_branch
          %1282 = sbr.rel (%p1280) target = $region44
        $region43: #{tpu_custom_call.1} parent=39 // pred_region
          %s1283 = smul.u32 16, %s19
          %s1285 = ssub.s32 2048, 2048
          %1286 = vsyncadd %s1276, %s1285
          %s1287 = smul.addr %s1283, 128
          %s1288 = scalar_lea.hbm %s5, %s1287
          %s1289 = sshll.u32 %s1279, 4
          %s1290 = int_to_ptr.vmem [resolvable:$true] %s1289
          %1295 = dma.vmem_to_hbm [thread:$0]  %s1290, 2048, %s1288, %s1276, 128, 128, 8
        $region44: #{tpu_custom_call.1} parent=39 // pred_fallthru
          _
      $region40: #{tpu_custom_call.1} parent=5 // pred_fallthru
        _
      %p1296 = scmp.le.s32.totalorder 2, %s14
      // Predicated region
      $region45: #{tpu_custom_call.1} parent=5 // pred_check
        %p1297 = pneg %p1296
      $region46: #{tpu_custom_call.1} parent=5 // pred_check_branch
        %1299 = sbr.rel (%p1297) target = $region48
      $region47: #{tpu_custom_call.1} parent=5 // pred_region
        %s1300 = ssub.s32 %s14, 2
        // Predicated region
        $region49: #{tpu_custom_call.1} parent=47 // pred_check
          %p1301 = pneg %p153
        $region50: #{tpu_custom_call.1} parent=47 // pred_check_branch
          %1303 = sbr.rel (%p1301) target = $region52
        $region51: #{tpu_custom_call.1} parent=47 // pred_region
          %s1304 = sand.u32 %s138, 1
          %s1305 = scalar_lea.sflag [#allocation3], %s1304
          %s1306 = sand.u32 %s138, 1
          %s1307 = smul.addr %s1306, 128
          %s1308 = scalar_lea.vmem [#allocation2], %s1307
          %1309 = dma.done %s1305, 2048
        $region52: #{tpu_custom_call.1} parent=47 // pred_fallthru
          _
      $region48: #{tpu_custom_call.1} parent=5 // pred_fallthru
        _
    $region6: #{tpu_custom_call.1} parent=1 // loop_footer
      %s18 = sadd.s32 1, %s14
    $region7: #{tpu_custom_call.1} parent=1 // loop_footer_branch
      %13 = sbr.rel target = $region3
    $region8: #{tpu_custom_call.1} parent=1 // loop_exit
      _
    %1310 = vsyncpa [#allocation3], 1
    %s1311 = scalar_lea.sflag [#allocation3], 1
    %1312 = vsyncpa %s1311, 1

</llo_original>
